<compile_context>
chip_gen: v7x
topology: tpu7x:2x2x1
jax: 0.10.0
libtpu: 0.0.40
codegen_flags: <defaults>
</compile_context>

<pallas_src>
import jax
import jax.numpy as jnp
from jax.experimental import pallas as pl
from jax.experimental.pallas import tpu as pltpu

# --- hyperparameters (stand-ins for `param.hidden_size` / `param.intermediate_size`) ---
HIDDEN_SIZE = 32
INTERMEDIATE_SIZE = 64
LEAKY_SLOPE = 0.01  # PyTorch nn.LeakyReLU default negative_slope


def _leaky_relu(x, slope):
    return jnp.where(x >= 0, x, slope * x)


def discriminator_kernel(x_ref, w1_ref, b1_ref, w2_ref, b2_ref, w3_ref, b3_ref,
                         out_ref):
    """Fused MLP forward: (Linear -> LeakyReLU) x2 -> Linear(., 1)."""
    # x arrives as f32 (no wrapper-side cast pass over HBM); cast to bf16 in-register
    # so the MXU runs at native bf16 rate with f32 accumulation.
    x16 = x_ref[...].astype(jnp.bfloat16)
    h1 = jnp.dot(x16, w1_ref[...], preferred_element_type=jnp.float32)
    h1 = _leaky_relu(h1 + b1_ref[...], LEAKY_SLOPE)

    # Layer 2: cast activations back to bf16 so the MXU stays in native bf16 mode.
    h2 = jnp.dot(h1.astype(jnp.bfloat16), w2_ref[...],
                 preferred_element_type=jnp.float32)
    h2 = _leaky_relu(h2 + b2_ref[...], LEAKY_SLOPE)

    # Layer 3: degenerate N=1 matmul replaced by VPU multiply + cross-lane reduce
    # (XLU), scalar bias from SMEM, lane-dense (1, block_b) store.
    # TODO(synk): bundle-check the sublane->lane relayout implied by reshaping the
    # (block_b,) reduce result to a (1, block_b) row; if it shows on the critical
    # path, do the transpose via the MXU (identity multiply) instead.
    logits = jnp.sum(h2 * w3_ref[...], axis=-1) + b3_ref[0]
    out_ref[...] = logits.reshape(out_ref.shape).astype(out_ref.dtype)


def prepare_params(w1, b1, w2, b2, w3, b3):
    """One-time parameter prep, hoisted out of the per-call forward."""
    I = w1.shape[1]
    return (w1.astype(jnp.bfloat16),
            b1.reshape(1, I).astype(jnp.float32),
            w2.astype(jnp.bfloat16),
            b2.reshape(1, I).astype(jnp.float32),
            w3.reshape(1, I).astype(jnp.float32),   # PyTorch layer-3 weight is (1, I)
            b3.reshape(1).astype(jnp.float32))


def _choose_block_b(B):
    """Batch-tile policy.

    * B <= 256: one full-array block (block == array dims is always layout-legal),
      grid of 1 -> minimum per-step overhead on single-TC parts (v5e/v6e).
    * larger B: MXU/lane-aligned tiles sized so the grid is ~2 "parallel" steps
      (keeps both v7x TensorCores busy), capped at 4096 rows per step.
    """
    if B <= 256:
        return B
    half = -(-B // 2)                    # ceil(B / 2)
    half = -(-half // 256) * 256         # round up to a 256 multiple (MXU/lane aligned)
    return min(half, 4096)


@jax.jit
def discriminator_forward(x, w1_16, b1f, w2_16, b2f, w3_row, b3_s):
    B, H = x.shape
    I = w1_16.shape[1]
    block_b = _choose_block_b(B)
    n_blocks = pl.cdiv(B, block_b)       # ragged B: last block partially OOB (masked)

    full = lambda shape: pl.BlockSpec(shape, lambda i: (0,) * len(shape))

    flops = 2 * B * (H * I + I * I + I)
    bytes_accessed = (B * H * 4            # x (f32, read once by the kernel)
                      + (H * I + I * I) * 2  # bf16 weights
                      + (2 * I + I + 1) * 4  # biases + w3 row + b3
                      + B * 4)               # output logits

    out_row = pl.pallas_call(
        discriminator_kernel,
        out_shape=jax.ShapeDtypeStruct((1, B), jnp.float32),
        grid_spec=pltpu.PrefetchScalarGridSpec(
            num_scalar_prefetch=0,
            grid=(n_blocks,),
            in_specs=[
                pl.BlockSpec((block_b, H), lambda i: (i, 0)),       # x batch tile (f32)
                full((H, I)),                                        # w1 (pre-transposed, bf16)
                full((1, I)),                                        # b1
                full((I, I)),                                        # w2 (pre-transposed, bf16)
                full((1, I)),                                        # b2
                full((1, I)),                                        # w3 as a lane row
                pl.BlockSpec(memory_space=pltpu.MemorySpace.SMEM),   # b3 scalar
            ],
            out_specs=pl.BlockSpec((1, block_b), lambda i: (0, i)),  # lane-dense slab
        ),
        compiler_params=pltpu.CompilerParams(
            dimension_semantics=("parallel",)),
        cost_estimate=pl.CostEstimate(flops=flops, transcendentals=0,
                                      bytes_accessed=bytes_accessed),
    )(x, w1_16, b1f, w2_16, b2f, w3_row, b3_s)

    # (1, B) row -> (B, 1) column, same flat order.
    return out_row.reshape(B, 1)


def init_params(key, hidden_size, intermediate_size):
    """Deterministic init matching PyTorch Linear shapes.

    PyTorch stores weight as (out, in); layers 1 & 2 are kept pre-transposed as
    (in, out) so the kernel computes x @ W.  Layer 3's (1, intermediate) weight is
    already the row form the kernel consumes.
    """
    ks = jax.random.split(key, 6)

    def uniform(k, shape, fan_in):
        bound = 1.0 / jnp.sqrt(fan_in)
        return jax.random.uniform(k, shape, jnp.float32, -bound, bound)

    w1 = uniform(ks[0], (hidden_size, intermediate_size), hidden_size)
    b1 = uniform(ks[1], (1, intermediate_size), hidden_size)
    w2 = uniform(ks[2], (intermediate_size, intermediate_size), intermediate_size)
    b2 = uniform(ks[3], (1, intermediate_size), intermediate_size)
    w3 = uniform(ks[4], (1, intermediate_size), intermediate_size)
    b3 = uniform(ks[5], (1,), intermediate_size)
    return w1, b1, w2, b2, w3, b3


def reference_forward(x, w1, b1, w2, b2, w3, b3):
    """Pure-JAX reference emulating the kernel's bf16-input / f32-accumulate math.

    Note: this matches the kernel's quantized math; a true f32 PyTorch model differs
    by O(1e-2) relative due to bf16 quantization of x / w1 / w2 / h1.
    """
    hp = jax.lax.Precision.HIGHEST
    q = lambda a: a.astype(jnp.bfloat16).astype(jnp.float32)
    h1 = jnp.dot(q(x), q(w1), precision=hp) + b1
    h1 = jnp.where(h1 >= 0, h1, LEAKY_SLOPE * h1)
    h2 = jnp.dot(q(h1), q(w2), precision=hp) + b2
    h2 = jnp.where(h2 >= 0, h2, LEAKY_SLOPE * h2)
    return jnp.sum(h2 * w3, axis=-1, keepdims=True) + b3


if __name__ == "__main__":
    key = jax.random.PRNGKey(0)
    k_x, k_p = jax.random.split(key)
    raw_params = init_params(k_p, HIDDEN_SIZE, INTERMEDIATE_SIZE)
    params = prepare_params(*raw_params)   # one-time prep, not per-call

    # Small case (single full-array block, grid of 1): batch=8, hidden=32.
    x = jax.random.normal(k_x, (8, HIDDEN_SIZE), jnp.float32)
    out = jax.block_until_ready(discriminator_forward(x, *params))
    ref = reference_forward(x, *raw_params)
    assert out.shape == (8, 1), out.shape
    assert jnp.allclose(out, ref, atol=1e-2, rtol=1e-2), float(
        jnp.max(jnp.abs(out - ref)))

    # Two even parallel steps (v7x megacore path): B=1024 -> block_b=512, grid=(2,).
    x_big = jax.random.normal(jax.random.PRNGKey(1), (1024, HIDDEN_SIZE), jnp.float32)
    out_big = jax.block_until_ready(discriminator_forward(x_big, *params))
    ref_big = reference_forward(x_big, *raw_params)
    assert out_big.shape == (1024, 1), out_big.shape
    assert jnp.allclose(out_big, ref_big, atol=1e-2, rtol=1e-2)

    # Ragged batch: no wrapper-side pad/copy; last block is partially out of bounds
    # (OOB input rows are garbage, OOB output lanes are dropped by Pallas).
    x_rag = jax.random.normal(jax.random.PRNGKey(2), (600, HIDDEN_SIZE), jnp.float32)
    out_rag = jax.block_until_ready(discriminator_forward(x_rag, *params))
    ref_rag = reference_forward(x_rag, *raw_params)
    assert out_rag.shape == (600, 1), out_rag.shape
    assert jnp.allclose(out_rag, ref_rag, atol=1e-2, rtol=1e-2)

    print("KERNEL_OK")
</pallas_src>

<mosaic_0001>
module attributes {stable_mosaic.version = 11 : i64} {
  func.func @discriminator_kernel(%arg0: i32, %arg1: memref<8x32xf32, #tpu.memory_space<vmem>>, %arg2: memref<32x64xbf16, #tpu.memory_space<vmem>>, %arg3: memref<1x64xf32, #tpu.memory_space<vmem>>, %arg4: memref<64x64xbf16, #tpu.memory_space<vmem>>, %arg5: memref<1x64xf32, #tpu.memory_space<vmem>>, %arg6: memref<1x64xf32, #tpu.memory_space<vmem>>, %arg7: memref<1xf32, #tpu.memory_space<smem>>, %arg8: memref<1x8xf32, #tpu.memory_space<vmem>>) attributes {dimension_semantics = [#tpu.dimension_semantics<parallel>], iteration_bounds = array<i64: 1>, scalar_prefetch = 0 : i64, scratch_operands = 0 : i64, tpu.core_type = #tpu.core_type<tc>, window_params = [{transform_indices = @transform_0, window_bounds = array<i64: 8, 32>}, {pipeline_mode = #tpu.pipeline_mode<synchronous>, transform_indices = @transform_1, window_bounds = array<i64: 32, 64>}, {pipeline_mode = #tpu.pipeline_mode<synchronous>, transform_indices = @transform_2, window_bounds = array<i64: 1, 64>}, {pipeline_mode = #tpu.pipeline_mode<synchronous>, transform_indices = @transform_3, window_bounds = array<i64: 64, 64>}, {pipeline_mode = #tpu.pipeline_mode<synchronous>, transform_indices = @transform_4, window_bounds = array<i64: 1, 64>}, {pipeline_mode = #tpu.pipeline_mode<synchronous>, transform_indices = @transform_5, window_bounds = array<i64: 1, 64>}, {transform_indices = @transform_6, window_bounds = array<i64: 1>}, {transform_indices = @transform_7, window_bounds = array<i64: 1, 8>}]} {
    %c0 = arith.constant 0 : index
    %c0_0 = arith.constant 0 : index
    %0 = vector.load %arg1[%c0, %c0_0] : memref<8x32xf32, #tpu.memory_space<vmem>>, vector<8x32xf32>
    %1 = arith.truncf %0 : vector<8x32xf32> to vector<8x32xbf16>
    %c0_1 = arith.constant 0 : index
    %c0_2 = arith.constant 0 : index
    %2 = vector.load %arg2[%c0_1, %c0_2] : memref<32x64xbf16, #tpu.memory_space<vmem>>, vector<32x64xbf16>
    %cst = arith.constant dense<0.000000e+00> : vector<8x64xf32>
    %3 = tpu.matmul %1, %2, %cst {dimension_numbers = #tpu.dot_dimension_numbers<[1], [0], [0], [1], [0, 0, 1, 1], [], []>} : vector<8x32xbf16>, vector<32x64xbf16>, vector<8x64xf32> -> vector<8x64xf32>
    %c0_3 = arith.constant 0 : index
    %c0_4 = arith.constant 0 : index
    %4 = vector.load %arg3[%c0_3, %c0_4] : memref<1x64xf32, #tpu.memory_space<vmem>>, vector<1x64xf32>
    %5 = vector.broadcast %4 : vector<1x64xf32> to vector<8x64xf32>
    %6 = arith.addf %3, %5 : vector<8x64xf32>
    %cst_5 = arith.constant 0.000000e+00 : f32
    %7 = vector.broadcast %cst_5 : f32 to vector<8x64xf32>
    %8 = arith.cmpf oge, %6, %7 : vector<8x64xf32>
    %cst_6 = arith.constant 0.00999999977 : f32
    %9 = vector.broadcast %cst_6 : f32 to vector<8x64xf32>
    %10 = arith.mulf %9, %6 : vector<8x64xf32>
    %11 = arith.select %8, %6, %10 : vector<8x64xi1>, vector<8x64xf32>
    %12 = arith.truncf %11 : vector<8x64xf32> to vector<8x64xbf16>
    %c0_7 = arith.constant 0 : index
    %c0_8 = arith.constant 0 : index
    %13 = vector.load %arg4[%c0_7, %c0_8] : memref<64x64xbf16, #tpu.memory_space<vmem>>, vector<64x64xbf16>
    %cst_9 = arith.constant dense<0.000000e+00> : vector<8x64xf32>
    %14 = tpu.matmul %12, %13, %cst_9 {dimension_numbers = #tpu.dot_dimension_numbers<[1], [0], [0], [1], [0, 0, 1, 1], [], []>} : vector<8x64xbf16>, vector<64x64xbf16>, vector<8x64xf32> -> vector<8x64xf32>
    %c0_10 = arith.constant 0 : index
    %c0_11 = arith.constant 0 : index
    %15 = vector.load %arg5[%c0_10, %c0_11] : memref<1x64xf32, #tpu.memory_space<vmem>>, vector<1x64xf32>
    %16 = vector.broadcast %15 : vector<1x64xf32> to vector<8x64xf32>
    %17 = arith.addf %14, %16 : vector<8x64xf32>
    %cst_12 = arith.constant 0.000000e+00 : f32
    %18 = vector.broadcast %cst_12 : f32 to vector<8x64xf32>
    %19 = arith.cmpf oge, %17, %18 : vector<8x64xf32>
    %cst_13 = arith.constant 0.00999999977 : f32
    %20 = vector.broadcast %cst_13 : f32 to vector<8x64xf32>
    %21 = arith.mulf %20, %17 : vector<8x64xf32>
    %22 = arith.select %19, %17, %21 : vector<8x64xi1>, vector<8x64xf32>
    %c0_14 = arith.constant 0 : index
    %c0_15 = arith.constant 0 : index
    %23 = vector.load %arg6[%c0_14, %c0_15] : memref<1x64xf32, #tpu.memory_space<vmem>>, vector<1x64xf32>
    %24 = vector.broadcast %23 : vector<1x64xf32> to vector<8x64xf32>
    %25 = arith.mulf %22, %24 : vector<8x64xf32>
    %cst_16 = arith.constant dense<0.000000e+00> : vector<8xf32>
    %26 = vector.multi_reduction <add>, %25, %cst_16 [1] : vector<8x64xf32> to vector<8xf32>
    %c0_17 = arith.constant 0 : index
    %27 = memref.load %arg7[%c0_17] : memref<1xf32, #tpu.memory_space<smem>>
    %28 = vector.broadcast %27 : f32 to vector<8xf32>
    %29 = arith.addf %26, %28 : vector<8xf32>
    %30 = vector.shape_cast %29 : vector<8xf32> to vector<1x8xf32>
    %c0_18 = arith.constant 0 : index
    %c0_19 = arith.constant 0 : index
    %31 = vector.load %arg8[%c0_18, %c0_19] : memref<1x8xf32, #tpu.memory_space<vmem>>, vector<1x8xf32>
    tpu.vector_store %arg8[%c0_18, %c0_19], %30 {strides = array<i32>} : memref<1x8xf32, #tpu.memory_space<vmem>>, vector<1x8xf32>,
    return
  }
  func.func @transform_0(%arg0: i32) -> (i32, i32) {
    %c0_i32 = arith.constant 0 : i32
    %c0_i32_0 = arith.constant 0 : i32
    return %arg0, %c0_i32 : i32, i32
  }
  func.func @transform_1(%arg0: i32) -> (i32, i32) {
    %c0_i32 = arith.constant 0 : i32
    %c0_i32_0 = arith.constant 0 : i32
    %c0_i32_1 = arith.constant 0 : i32
    return %c0_i32, %c0_i32_0 : i32, i32
  }
  func.func @transform_2(%arg0: i32) -> (i32, i32) {
    %c0_i32 = arith.constant 0 : i32
    %c0_i32_0 = arith.constant 0 : i32
    %c0_i32_1 = arith.constant 0 : i32
    return %c0_i32, %c0_i32_0 : i32, i32
  }
  func.func @transform_3(%arg0: i32) -> (i32, i32) {
    %c0_i32 = arith.constant 0 : i32
    %c0_i32_0 = arith.constant 0 : i32
    %c0_i32_1 = arith.constant 0 : i32
    return %c0_i32, %c0_i32_0 : i32, i32
  }
  func.func @transform_4(%arg0: i32) -> (i32, i32) {
    %c0_i32 = arith.constant 0 : i32
    %c0_i32_0 = arith.constant 0 : i32
    %c0_i32_1 = arith.constant 0 : i32
    return %c0_i32, %c0_i32_0 : i32, i32
  }
  func.func @transform_5(%arg0: i32) -> (i32, i32) {
    %c0_i32 = arith.constant 0 : i32
    %c0_i32_0 = arith.constant 0 : i32
    %c0_i32_1 = arith.constant 0 : i32
    return %c0_i32, %c0_i32_0 : i32, i32
  }
  func.func @transform_6(%arg0: i32) -> i32 {
    %c0_i32 = arith.constant 0 : i32
    %c0_i32_0 = arith.constant 0 : i32
    return %c0_i32 : i32
  }
  func.func @transform_7(%arg0: i32) -> (i32, i32) {
    %c0_i32 = arith.constant 0 : i32
    %c0_i32_0 = arith.constant 0 : i32
    return %c0_i32, %arg0 : i32, i32
  }
}

</mosaic_0001>

<llo_original>
// kernel: discriminator_forward.1
$region0: #{discriminator_forward.1}
  #allocation0 [shape = 'u32[]', space=smem, size = 0x4, offset = 0x4, fixed_abs, tag = 'smem constant byte address 0x4 - core index']
  #allocation1 [shape = 'u32[144,128]{1,0:T(1,128)}', space=vmem, size = 0x12000, scoped, tag = 'internal scratch']
  #allocation2 [shape = 'f32[1]{0:T(128)S(6)}', space=smem, size = 0x200, scoped, tag = 'scoped memory for discriminator_forward.1']
  %s0 = inlined_call_operand.hbm [shape: f32[8,32], index: 0, kind: input, shape index: {}]
  %s1 = inlined_call_operand.hbm [shape: bf16[32,64], index: 1, kind: input, shape index: {}]
  %s2 = inlined_call_operand.vmem [shape: f32[1,64], index: 2, kind: input, shape index: {}]
  %s3 = inlined_call_operand.hbm [shape: bf16[64,64], index: 3, kind: input, shape index: {}]
  %s4 = inlined_call_operand.vmem [shape: f32[1,64], index: 4, kind: input, shape index: {}]
  %s5 = inlined_call_operand.vmem [shape: f32[1,64], index: 5, kind: input, shape index: {}]
  %s6 = inlined_call_operand.<no memory space> [shape: f32[1], index: 6, kind: input, shape index: {}]
  %s7 = inlined_call_operand.hbm [shape: f32[1,8], index: 7, kind: output, shape index: {}]
  %s8 = sld [smem:[#allocation0]]
  $region50: #{discriminator_forward.1} parent=0
    _
  %s10 = ssub.s32 1, %s8
  %s11 = scalar_select 0, %s10, %s8
  %12 = sst [smem:[#allocation2]] %s6
  $region1: #{discriminator_forward.1} parent=0
    #allocation3 [shape = 'u8[4096]{0}', space=vmem, size = 0x1000, scoped, tag = 'input window, operand 0, single buffered']
    #allocation4 [shape = 's32[1]{0}', space=sflag, size = 0x4, scoped, tag = 'scoped memory for discriminator_forward.1']
    #allocation5 [shape = 's32[1]{0}', space=sflag, size = 0x4, scoped, tag = 'scoped memory for discriminator_forward.1']
    #allocation6 [shape = 'u8[8192]{0}', space=vmem, size = 0x2000, scoped, tag = 'input window, operand 1, single buffered']
    #allocation7 [shape = 's32[1]{0}', space=sflag, size = 0x4, scoped, tag = 'scoped memory for discriminator_forward.1']
    #allocation8 [shape = 'u8[16384]{0}', space=vmem, size = 0x4000, scoped, tag = 'input window, operand 3, single buffered']
    #allocation9 [shape = 'u8[512]{0}', space=vmem, size = 0x400, scoped, tag = 'output window, operand 0, single buffered']
    %13 = vsyncpa [#allocation4], 0
    %14 = vsyncpa [#allocation7], 0
    %15 = vsyncpa [#allocation5], 0
    // Predicated region
    $region2: #{discriminator_forward.1} parent=1 // pred_check
      _
    $region3: #{discriminator_forward.1} parent=1 // pred_check_branch
      %17 = sbr.rel (0) target = $region5
    $region4: #{discriminator_forward.1} parent=1 // pred_region
      %s19 = ssub.s32 128, 128
      %20 = vsyncadd [#allocation4], %s19
      %s22 = sshll.u32 [#allocation3], 4
      %s23 = int_to_ptr.vmem [resolvable:$true] %s22
      %25 = dma.hbm_to_vmem [thread:$0]  %s0, 128, %s23, [#allocation4]
    $region5: #{discriminator_forward.1} parent=1 // pred_fallthru
      _
    // Predicated region
    $region6: #{discriminator_forward.1} parent=1 // pred_check
      _
    $region7: #{discriminator_forward.1} parent=1 // pred_check_branch
      %27 = sbr.rel (0) target = $region9
    $region8: #{discriminator_forward.1} parent=1 // pred_region
      %s29 = ssub.s32 256, 256
      %30 = vsyncadd [#allocation7], %s29
      %s31 = sshll.u32 [#allocation6], 4
      %s32 = int_to_ptr.vmem [resolvable:$true] %s31
      %37 = dma.hbm_to_vmem [thread:$0]  %s1, 256, %s32, [#allocation7], 64, 64, 4
    $region9: #{discriminator_forward.1} parent=1 // pred_fallthru
      _
    // Predicated region
    $region10: #{discriminator_forward.1} parent=1 // pred_check
      _
    $region11: #{discriminator_forward.1} parent=1 // pred_check_branch
      %39 = sbr.rel (0) target = $region13
    $region12: #{discriminator_forward.1} parent=1 // pred_region
      _
    $region13: #{discriminator_forward.1} parent=1 // pred_fallthru
      _
    // Predicated region
    $region14: #{discriminator_forward.1} parent=1 // pred_check
      _
    $region15: #{discriminator_forward.1} parent=1 // pred_check_branch
      %41 = sbr.rel (0) target = $region17
    $region16: #{discriminator_forward.1} parent=1 // pred_region
      %s43 = ssub.s32 512, 512
      %44 = vsyncadd [#allocation7], %s43
      %s45 = sshll.u32 [#allocation8], 4
      %s46 = int_to_ptr.vmem [resolvable:$true] %s45
      %51 = dma.hbm_to_vmem [thread:$0]  %s3, 512, %s46, [#allocation7], 64, 64, 4
    $region17: #{discriminator_forward.1} parent=1 // pred_fallthru
      _
    // Predicated region
    $region18: #{discriminator_forward.1} parent=1 // pred_check
      _
    $region19: #{discriminator_forward.1} parent=1 // pred_check_branch
      %53 = sbr.rel (0) target = $region21
    $region20: #{discriminator_forward.1} parent=1 // pred_region
      _
    $region21: #{discriminator_forward.1} parent=1 // pred_fallthru
      _
    // Predicated region
    $region22: #{discriminator_forward.1} parent=1 // pred_check
      _
    $region23: #{discriminator_forward.1} parent=1 // pred_check_branch
      %55 = sbr.rel (0) target = $region25
    $region24: #{discriminator_forward.1} parent=1 // pred_region
      _
    $region25: #{discriminator_forward.1} parent=1 // pred_fallthru
      _
    // Predicated region
    $region26: #{discriminator_forward.1} parent=1 // pred_check
      _
    $region27: #{discriminator_forward.1} parent=1 // pred_check_branch
      %57 = sbr.rel (0) target = $region29
    $region28: #{discriminator_forward.1} parent=1 // pred_region
      _
    $region29: #{discriminator_forward.1} parent=1 // pred_fallthru
      _
    // Predicated region
    $region30: #{discriminator_forward.1} parent=1 // pred_check
      _
    $region31: #{discriminator_forward.1} parent=1 // pred_check_branch
      %59 = sbr.rel (0) target = $region33
    $region32: #{discriminator_forward.1} parent=1 // pred_region
      %60 = dma.done [#allocation4], 128
    $region33: #{discriminator_forward.1} parent=1 // pred_fallthru
      _
    // Predicated region
    $region34: #{discriminator_forward.1} parent=1 // pred_check
      _
    $region35: #{discriminator_forward.1} parent=1 // pred_check_branch
      %62 = sbr.rel (0) target = $region37
    $region36: #{discriminator_forward.1} parent=1 // pred_region
      %63 = dma.done [#allocation7], 256
    $region37: #{discriminator_forward.1} parent=1 // pred_fallthru
      _
    // Predicated region
    $region38: #{discriminator_forward.1} parent=1 // pred_check
      _
    $region39: #{discriminator_forward.1} parent=1 // pred_check_branch
      %65 = sbr.rel (0) target = $region41
    $region40: #{discriminator_forward.1} parent=1 // pred_region
      %66 = dma.done [#allocation7], 512
    $region41: #{discriminator_forward.1} parent=1 // pred_fallthru
      _
    %v68 = vld [vmem:[#allocation3] sm:$0xff]
    %v69 = vpack.c.bf16 %v68, %v68
    %v70 = vld [vmem:[#allocation6] sm:$0xf]
    %v71 = vld [vmem:[#allocation6 + $0x4] sm:$0xf]
    %v72 = vld [vmem:[#allocation6 + $0x8] sm:$0xf]
    %v73 = vld [vmem:[#allocation6 + $0xc] sm:$0xf]
    %v74 = vld [vmem:[%s2] sm:$0x1]
    %v76 = vlaneseq
    %v77 = vshrl.u32 %v76, 7
    %v78 = vsub.s32 0, %v77
    %v79 = vrot.slane %v74, %v78
    %v85 = vunpack.c.l.b16 %v70
    %v86 = vunpack.c.l.b16 %v71
    %v87 = vunpack.c.l.b16 %v72
    %v88 = vunpack.c.l.b16 %v73
    %v89 = vpack.c.b16 %v86, %v85
    %v90 = vpack.c.b16 %v88, %v87
    %vm93 = vcmask 261120
    %v95 = vsel %vm93, %v69, 0
    %97 = vmatprep.subr.bf16.mxu0 0
    %98 = vmatpush1.bf16.msra.mxu0 %v89
    %99 = vmatprep.subr.bf16.mxu0 0
    %100 = vmatpush1.bf16.msra.mxu0 %v90
    %101 = vmatprep.subr.bf16.mxu0 0
    %102 = vmatpush1.bf16.msra.mxu0 0
    %103 = vmatprep.subr.bf16.mxu0 0
    %104 = vmatpush1.bf16.msra.mxu0 0
    %105 = vmatprep.subr.bf16.mxu0 0
    %106 = vmatpush1.bf16.msra.mxu0 0
    %107 = vmatprep.subr.bf16.mxu0 0
    %108 = vmatpush1.bf16.msra.mxu0 0
    %109 = vmatprep.subr.bf16.mxu0 0
    %110 = vmatpush1.bf16.msra.mxu0 0
    %111 = vmatprep.subr.bf16.mxu0 0
    %112 = vmatpush1.bf16.msra.mxu0 0
    %113 = vmatprep.subr.bf16.mxu0 0
    %114 = vmatpush1.bf16.msra.mxu0 0
    %115 = vmatprep.subr.bf16.mxu0 0
    %116 = vmatpush1.bf16.msra.mxu0 0
    %117 = vmatprep.subr.bf16.mxu0 0
    %118 = vmatpush1.bf16.msra.mxu0 0
    %119 = vmatprep.subr.bf16.mxu0 0
    %120 = vmatpush1.bf16.msra.mxu0 0
    %121 = vmatprep.subr.bf16.mxu0 0
    %122 = vmatpush1.bf16.msra.mxu0 0
    %123 = vmatprep.subr.bf16.mxu0 0
    %124 = vmatpush1.bf16.msra.mxu0 0
    %125 = vmatprep.subr.bf16.mxu0 0
    %126 = vmatpush1.bf16.msra.mxu0 0
    %127 = vmatprep.subr.bf16.mxu0 0
    %128 = vmatpush1.bf16.msra.mxu0 0
    %129 = vmatprep.mubr.bf16.mxu0 0
    %130 = vmatmul.mubr.bf16.gmra.mrb[0].mxu0 %v95
    %v131 = vpop.f32.mrb[0].mxu0
    %v132 = vadd.f32 %v79, %v131
    %v133 = vpop.f32.mrb[0].mxu0
    %v134 = vpop.f32.mrb[0].mxu0
    %v135 = vpop.f32.mrb[0].mxu0
    %136 = vdwg.mxu0
    %vm137 = vcmp.ge.f32.partialorder %v132, 0.0
    %v138 = vmul.f32 %v132, 0.01
    %v139 = vsel %vm137, %v132, %v138
    %v140 = vpack.c.bf16 %v139, %v139
    %v141 = vld [vmem:[#allocation8] sm:$0xf]
    %v142 = vld [vmem:[#allocation8 + $0x4] sm:$0xf]
    %v143 = vld [vmem:[#allocation8 + $0x8] sm:$0xf]
    %v144 = vld [vmem:[#allocation8 + $0xc] sm:$0xf]
    %v145 = vld [vmem:[#allocation8 + $0x10] sm:$0xf]
    %v146 = vld [vmem:[#allocation8 + $0x14] sm:$0xf]
    %v147 = vld [vmem:[#allocation8 + $0x18] sm:$0xf]
    %v148 = vld [vmem:[#allocation8 + $0x1c] sm:$0xf]
    %v149 = vld [vmem:[%s4] sm:$0x1]
    %v151 = vlaneseq
    %v152 = vshrl.u32 %v151, 7
    %v153 = vsub.s32 0, %v152
    %v154 = vrot.slane %v149, %v153
    %v164 = vunpack.c.l.b16 %v141
    %v165 = vunpack.c.l.b16 %v142
    %v166 = vunpack.c.l.b16 %v143
    %v167 = vunpack.c.l.b16 %v144
    %v168 = vunpack.c.l.b16 %v145
    %v169 = vunpack.c.l.b16 %v146
    %v170 = vunpack.c.l.b16 %v147
    %v171 = vunpack.c.l.b16 %v148
    %v172 = vpack.c.b16 %v165, %v164
    %v173 = vpack.c.b16 %v167, %v166
    %v174 = vpack.c.b16 %v169, %v168
    %v175 = vpack.c.b16 %v171, %v170
    %vm180 = vcmask 523264
    %v182 = vsel %vm180, %v140, 0
    %184 = vmatprep.subr.bf16.mxu0 0
    %185 = vmatpush1.bf16.msra.mxu0 %v172
    %186 = vmatprep.subr.bf16.mxu0 0
    %187 = vmatpush1.bf16.msra.mxu0 %v173
    %188 = vmatprep.subr.bf16.mxu0 0
    %189 = vmatpush1.bf16.msra.mxu0 %v174
    %190 = vmatprep.subr.bf16.mxu0 0
    %191 = vmatpush1.bf16.msra.mxu0 %v175
    %192 = vmatprep.subr.bf16.mxu0 0
    %193 = vmatpush1.bf16.msra.mxu0 0
    %194 = vmatprep.subr.bf16.mxu0 0
    %195 = vmatpush1.bf16.msra.mxu0 0
    %196 = vmatprep.subr.bf16.mxu0 0
    %197 = vmatpush1.bf16.msra.mxu0 0
    %198 = vmatprep.subr.bf16.mxu0 0
    %199 = vmatpush1.bf16.msra.mxu0 0
    %200 = vmatprep.subr.bf16.mxu0 0
    %201 = vmatpush1.bf16.msra.mxu0 0
    %202 = vmatprep.subr.bf16.mxu0 0
    %203 = vmatpush1.bf16.msra.mxu0 0
    %204 = vmatprep.subr.bf16.mxu0 0
    %205 = vmatpush1.bf16.msra.mxu0 0
    %206 = vmatprep.subr.bf16.mxu0 0
    %207 = vmatpush1.bf16.msra.mxu0 0
    %208 = vmatprep.subr.bf16.mxu0 0
    %209 = vmatpush1.bf16.msra.mxu0 0
    %210 = vmatprep.subr.bf16.mxu0 0
    %211 = vmatpush1.bf16.msra.mxu0 0
    %212 = vmatprep.subr.bf16.mxu0 0
    %213 = vmatpush1.bf16.msra.mxu0 0
    %214 = vmatprep.subr.bf16.mxu0 0
    %215 = vmatpush1.bf16.msra.mxu0 0
    %216 = vmatprep.mubr.bf16.mxu0 0
    %217 = vmatmul.mubr.bf16.gmra.mrb[0].mxu0 %v182
    %v218 = vpop.f32.mrb[0].mxu0
    %v219 = vadd.f32 %v154, %v218
    %v220 = vpop.f32.mrb[0].mxu0
    %v221 = vpop.f32.mrb[0].mxu0
    %v222 = vpop.f32.mrb[0].mxu0
    %223 = vdwg.mxu0
    %vm224 = vcmp.ge.f32.partialorder %v219, 0.0
    %v225 = vmul.f32 %v219, 0.01
    %v226 = vsel %vm224, %v219, %v225
    %v227 = vld [vmem:[%s5] sm:$0x1]
    %v229 = vlaneseq
    %v230 = vshrl.u32 %v229, 7
    %v231 = vsub.s32 0, %v230
    %v232 = vrot.slane %v227, %v231
    %v234 = vmul.f32 %v226, %v232
    %v235 = vsel %vm180, %v234, 0.0
    %236 = vadd.xlane.f32.xlu0 %v235
    %v237 = vpop.xlane.xlu0 %236
    %s238 = sld [smem:[#allocation2]]
    %v239 = vstv %s238
    %v240 = vadd.f32 %v237, %v239
    %v242 = vlaneseq
    %v243 = vand.u32 %v242, 127
    %v244 = vlaneseq
    %v245 = vshrl.u32 %v244, 7
    %v246 = vsub.s32 %v243, %v245
    %v247 = vrot.slane %v240, %v246
    %vm249 = vcmask 57344
    %250 = vst.msk [vmem:[#allocation9] sm:$0x1] %vm249, %v247
    // Predicated region
    $region42: #{discriminator_forward.1} parent=1 // pred_check
      _
    $region43: #{discriminator_forward.1} parent=1 // pred_check_branch
      %252 = sbr.rel (0) target = $region45
    $region44: #{discriminator_forward.1} parent=1 // pred_region
      %s254 = ssub.s32 16, 16
      %255 = vsyncadd [#allocation5], %s254
      %s257 = sshll.u32 [#allocation9], 4
      %s258 = int_to_ptr.vmem [resolvable:$true] %s257
      %260 = dma.vmem_to_hbm [thread:$0]  %s258, 16, %s7, [#allocation5]
    $region45: #{discriminator_forward.1} parent=1 // pred_fallthru
      _
    // Predicated region
    $region46: #{discriminator_forward.1} parent=1 // pred_check
      _
    $region47: #{discriminator_forward.1} parent=1 // pred_check_branch
      %262 = sbr.rel (0) target = $region49
    $region48: #{discriminator_forward.1} parent=1 // pred_region
      %263 = dma.done [#allocation5], 16
    $region49: #{discriminator_forward.1} parent=1 // pred_fallthru
      _
    %264 = vsyncpa [#allocation4], 1
    %265 = vsyncpa [#allocation7], 1
    %266 = vsyncpa [#allocation5], 1

</llo_original>
